<compile_context>
chip_gen: v5e
topology: v5e:2x2
jax: 0.10.0
libtpu: 0.0.40
codegen_flags: <defaults>
</compile_context>

<pallas_src>
import functools

import jax
import jax.numpy as jnp
from jax import lax
from jax.experimental import pallas as pl
from jax.experimental.pallas import tpu as pltpu


# -----------------------------------------------------------------------------
# One-time probe: pin down pltpu.roll's rotation direction (vs. jnp.roll) so the
# in-kernel shifted-tap construction is direction-proof.
# -----------------------------------------------------------------------------
@functools.lru_cache(maxsize=None)
def _roll_is_like_jnp_roll() -> bool:
    def k(x_ref, o_ref):
        o_ref[...] = pltpu.roll(x_ref[...], shift=17, axis=1)

    x = jnp.arange(8 * 256, dtype=jnp.float32).reshape(8, 256)
    y = pl.pallas_call(
        k, out_shape=jax.ShapeDtypeStruct((8, 256), jnp.float32))(x)
    return bool(jnp.array_equal(y, jnp.roll(x, 17, axis=1)))


# -----------------------------------------------------------------------------
# Fused AFDB forward (NCHW in / NCHW out, matching the PyTorch module)
# -----------------------------------------------------------------------------
def afdb_forward(x_nchw, params):
    N, C, H, W = x_nchw.shape
    dc = C // 2                      # distilled channels
    ac = C // 2                      # per-branch ATB channels
    M = H * W
    bf16 = jnp.bfloat16

    # ---------------- weight packing (plain JAX, tiny, done once per call) ---
    def t3(w):                       # (3,3,Cin,Cout) HWIO -> (Cout, 9*Cin)
        kh, kw, ci, co = w.shape
        return jnp.transpose(w.reshape(kh * kw * ci, co))

    def merge_r_d(w3, w1x1):
        # 3x3 conv and 1x1 conv that share an input, stacked along Cout:
        #   rows [0:C)     -> 3x3 "r" branch (residual added in-kernel)
        #   rows [C:C+dc)  -> 1x1 "d" branch, embedded in the centre tap (t=4)
        ci, co1 = w1x1.shape
        d = jnp.zeros((co1, 9 * ci), w1x1.dtype)
        d = d.at[:, 4 * ci:5 * ci].set(jnp.transpose(w1x1))
        return jnp.concatenate([t3(w3), d], axis=0)

    def block_diag_3x3(w_up, w_dn):  # two (3,3,ac,ac) -> (3,3,2ac,2ac)
        w = jnp.zeros((3, 3, 2 * ac, 2 * ac), w_up.dtype)
        w = w.at[:, :, :ac, :ac].set(w_up)
        w = w.at[:, :, ac:, ac:].set(w_dn)
        return w

    w1m = merge_r_d(params["c1_r"], params["c1_d"]).astype(bf16)   # (C+dc, 9C)
    w2m = merge_r_d(params["c2_r"], params["c2_d"]).astype(bf16)
    w3m = merge_r_d(params["c3_r"], params["c3_d"]).astype(bf16)
    w4t = t3(params["c4"]).astype(bf16)                            # (dc, 9C)
    c5 = params["c5"]                                              # (4*dc, C)
    w5p = jnp.stack([jnp.transpose(c5[j * dc:(j + 1) * dc, :])
                     for j in range(4)]).astype(bf16)              # (4, C, dc)
    wa1 = t3(block_diag_3x3(params["atb11_w"], params["atb22_w"])).astype(bf16)
    wa2 = t3(block_diag_3x3(params["atb12_w"], params["atb21_w"])).astype(bf16)
    ba1 = jnp.concatenate([params["atb11_b"], params["atb22_b"]]).reshape(C, 1)
    ba2 = jnp.concatenate([params["atb12_b"], params["atb21_b"]]).reshape(C, 1)

    # ---------------- boundary masks for the 9 taps ("SAME" zero padding) ----
    offs = [(oy, ox) for oy in (-1, 0, 1) for ox in (-1, 0, 1)]
    yy = jnp.arange(H, dtype=jnp.int32).reshape(H, 1)
    xx = jnp.arange(W, dtype=jnp.int32).reshape(1, W)
    masks = jnp.stack([
        ((yy + oy >= 0) & (yy + oy < H) & (xx + ox >= 0) & (xx + ox < W))
        .astype(jnp.float32).reshape(1, M)
        for oy, ox in offs])                                       # (9, 1, M)

    shifts = [oy * W + ox for oy, ox in offs]
    roll_like_jnp = _roll_is_like_jnp_roll()

    def roll_amount(s):
        # we want shifted[:, m] == x[:, (m + s) % M]
        return (-s) % M if roll_like_jnp else s % M

    x3 = x_nchw.reshape(N, C, M)

    # ---------------- the fused kernel (one image per grid step) -------------
    def kernel(x_ref, mask_ref, w1_ref, w2_ref, w3_ref, w4_ref, w5_ref,
               wa1_ref, wa2_ref, ba1_ref, ba2_ref, o_ref):
        x = x_ref[...]                                   # (C, M) f32

        def lrelu(v, slope):
            return jnp.where(v >= 0, v, v * slope)

        def conv3x3(inp, w_ref):
            # "SAME" 3x3 conv in (Cin, H*W) layout: 9 lane rotations + boundary
            # masks build the im2col columns in VMEM, then one MXU pass.
            taps = []
            for t, s in enumerate(shifts):
                if s == 0:
                    taps.append(inp)                     # centre tap, mask == 1
                else:
                    r = pltpu.roll(inp, shift=roll_amount(s), axis=1)
                    taps.append(r * mask_ref[t])         # (1, M) mask broadcast
            cols = jnp.concatenate(taps, axis=0).astype(jnp.bfloat16)
            return jnp.dot(w_ref[...], cols,
                           preferred_element_type=jnp.float32)

        def conv1x1(inp, w):                             # w: (Cout, Cin) bf16
            return jnp.dot(w, inp.astype(jnp.bfloat16),
                           preferred_element_type=jnp.float32)

        # --- distillation chain (1x1 folded into the 3x3 centre tap) --------
        y1 = conv3x3(x, w1_ref)                          # (C+dc, M)
        r1 = lrelu(y1[:C] + x, 0.05)
        d1 = lrelu(y1[C:], 0.05)

        y2 = conv3x3(r1, w2_ref)
        r2 = lrelu(y2[:C] + r1, 0.05)
        d2 = lrelu(y2[C:], 0.05)

        y3 = conv3x3(r2, w3_ref)
        r3 = lrelu(y3[:C] + r2, 0.05)
        d3 = lrelu(y3[C:], 0.05)

        r4 = lrelu(conv3x3(r3, w4_ref), 0.05)            # (dc, M)

        # --- c5 1x1 over concat([d1,d2,d3,r4]) == sum of 4 partial matmuls --
        fused = (conv1x1(d1, w5_ref[0]) + conv1x1(d2, w5_ref[1]) +
                 conv1x1(d3, w5_ref[2]) + conv1x1(r4, w5_ref[3]))  # (C, M)

        # --- ATB: both halves at once via block-diagonal weights -------------
        a1 = lrelu(conv3x3(fused, wa1_ref) + ba1_ref[...], 0.1)
        a2 = conv3x3(a1, wa2_ref) + ba2_ref[...]
        gate = pl.reciprocal(1.0 + jnp.exp(-a2), approx=False)     # sigmoid
        o_ref[...] = (fused * gate).astype(o_ref.dtype)

    out = pl.pallas_call(
        kernel,
        out_shape=jax.ShapeDtypeStruct((N, C, M), x_nchw.dtype),
        grid=(N,),
        in_specs=[
            pl.BlockSpec((None, C, M), lambda n: (n, 0, 0)),      # x
            pl.BlockSpec((9, 1, M), lambda n: (0, 0, 0)),         # tap masks
            pl.BlockSpec((C + dc, 9 * C), lambda n: (0, 0)),      # w1 (r|d)
            pl.BlockSpec((C + dc, 9 * C), lambda n: (0, 0)),      # w2 (r|d)
            pl.BlockSpec((C + dc, 9 * C), lambda n: (0, 0)),      # w3 (r|d)
            pl.BlockSpec((dc, 9 * C), lambda n: (0, 0)),          # w4
            pl.BlockSpec((4, C, dc), lambda n: (0, 0, 0)),        # w5 parts
            pl.BlockSpec((C, 9 * C), lambda n: (0, 0)),           # ATB lvl 1
            pl.BlockSpec((C, 9 * C), lambda n: (0, 0)),           # ATB lvl 2
            pl.BlockSpec((C, 1), lambda n: (0, 0)),               # ATB bias 1
            pl.BlockSpec((C, 1), lambda n: (0, 0)),               # ATB bias 2
        ],
        out_specs=pl.BlockSpec((None, C, M), lambda n: (n, 0, 0)),
        compiler_params=pltpu.CompilerParams(
            dimension_semantics=("parallel",)),
        # NOTE: total VMEM footprint is <1 MiB here; for realistic H/W/C add an
        # M (spatial) grid axis and set vmem_limit_bytes per generation.
    )(x3, masks, w1m, w2m, w3m, w4t, w5p, wa1, wa2, ba1, ba2)

    return out.reshape(N, C, H, W)


# -----------------------------------------------------------------------------
# Pure-JAX reference (lax.conv, f32 HIGHEST) for correctness checking
# -----------------------------------------------------------------------------
def _ref_conv(x, w_hwio, padding):
    return lax.conv_general_dilated(
        x, w_hwio, (1, 1), padding,
        dimension_numbers=("NHWC", "HWIO", "NHWC"),
        precision=lax.Precision.HIGHEST)


def _ref_lrelu(x, s):
    return jnp.where(x >= 0, x, x * s)


def _ref_sigmoid(x):
    return 1.0 / (1.0 + jnp.exp(-x))


def afdb_reference(x_nchw, p):
    x = jnp.transpose(x_nchw, (0, 2, 3, 1))
    c11 = lambda w: w.reshape(1, 1, *w.shape)

    d1 = _ref_lrelu(_ref_conv(x, c11(p["c1_d"]), "VALID"), 0.05)
    r1 = _ref_lrelu(_ref_conv(x, p["c1_r"], "SAME") + x, 0.05)
    d2 = _ref_lrelu(_ref_conv(r1, c11(p["c2_d"]), "VALID"), 0.05)
    r2 = _ref_lrelu(_ref_conv(r1, p["c2_r"], "SAME") + r1, 0.05)
    d3 = _ref_lrelu(_ref_conv(r2, c11(p["c3_d"]), "VALID"), 0.05)
    r3 = _ref_lrelu(_ref_conv(r2, p["c3_r"], "SAME") + r2, 0.05)
    r4 = _ref_lrelu(_ref_conv(r3, p["c4"], "SAME"), 0.05)

    out = jnp.concatenate([d1, d2, d3, r4], axis=-1)
    fused = _ref_conv(out, c11(p["c5"]), "VALID")

    ch = fused.shape[-1] // 2
    f0, f1 = fused[..., :ch], fused[..., ch:]
    up = f0 * _ref_sigmoid(
        _ref_conv(_ref_lrelu(_ref_conv(f0, p["atb11_w"], "SAME")
                             + p["atb11_b"], 0.1),
                  p["atb12_w"], "SAME") + p["atb12_b"])
    dn = f1 * _ref_sigmoid(
        _ref_conv(_ref_lrelu(_ref_conv(f1, p["atb22_w"], "SAME")
                             + p["atb22_b"], 0.1),
                  p["atb21_w"], "SAME") + p["atb21_b"])
    out_nhwc = jnp.concatenate([up, dn], axis=-1)
    return jnp.transpose(out_nhwc, (0, 3, 1, 2))


# -----------------------------------------------------------------------------
# Deterministic parameter init + main
# -----------------------------------------------------------------------------
def init_params(key, in_channels):
    dc = in_channels // 2
    rc = in_channels
    atb_ch = in_channels // 2
    shapes = {
        "c1_d": (in_channels, dc),
        "c1_r": (3, 3, in_channels, rc),
        "c2_d": (rc, dc),
        "c2_r": (3, 3, rc, rc),
        "c3_d": (rc, dc),
        "c3_r": (3, 3, rc, rc),
        "c4": (3, 3, rc, dc),
        "c5": (dc * 4, in_channels),
        "atb11_w": (3, 3, atb_ch, atb_ch),
        "atb12_w": (3, 3, atb_ch, atb_ch),
        "atb21_w": (3, 3, atb_ch, atb_ch),
        "atb22_w": (3, 3, atb_ch, atb_ch),
        "atb11_b": (atb_ch,),
        "atb12_b": (atb_ch,),
        "atb21_b": (atb_ch,),
        "atb22_b": (atb_ch,),
    }
    params = {}
    keys = jax.random.split(key, len(shapes))
    for k, (name, shape) in zip(keys, sorted(shapes.items())):
        scale = 0.1 if len(shape) > 1 else 0.05
        params[name] = scale * jax.random.normal(k, shape, dtype=jnp.float32)
    return params


if __name__ == "__main__":
    in_channels = 8
    N, H, W = 2, 16, 16

    root = jax.random.PRNGKey(0)
    kx, kp = jax.random.split(root)
    x = jax.random.normal(kx, (N, in_channels, H, W), dtype=jnp.float32)  # NCHW
    params = init_params(kp, in_channels)

    _roll_is_like_jnp_roll()          # warm the (cached) direction probe eagerly

    out = jax.jit(afdb_forward)(x, params)
    out = jax.block_until_ready(out)

    ref = jax.block_until_ready(afdb_reference(x, params))
    assert out.shape == (N, in_channels, H, W), out.shape
    err = float(jnp.max(jnp.abs(out - ref)))
    # Tolerance accounts for bf16 MXU operands (f32 accumulate) in the kernel vs
    # the f32 HIGHEST reference across ~7 chained convs; structural/layout bugs
    # would produce errors orders of magnitude larger than this.
    assert err < 5e-2, f"max abs error too large: {err}"

    print("KERNEL_OK")
</pallas_src>

<mosaic_0001>
module attributes {stable_mosaic.version = 11 : i64} {
  func.func @k(%arg0: memref<8x256xf32, #tpu.memory_space<vmem>>, %arg1: memref<8x256xf32, #tpu.memory_space<vmem>>) attributes {dimension_semantics = [], scalar_prefetch = 0 : i64, scratch_operands = 0 : i64, tpu.core_type = #tpu.core_type<tc>} {
    %c0 = arith.constant 0 : index
    %c0_0 = arith.constant 0 : index
    %0 = vector.load %arg0[%c0, %c0_0] : memref<8x256xf32, #tpu.memory_space<vmem>>, vector<8x256xf32>
    %c17_i32 = arith.constant 17 : i32
    %1 = tpu.dynamic_rotate %0 by %c17_i32 dim 1 : vector<8x256xf32>, i32 -> vector<8x256xf32>
    %c0_1 = arith.constant 0 : index
    %c0_2 = arith.constant 0 : index
    %2 = vector.load %arg1[%c0_1, %c0_2] : memref<8x256xf32, #tpu.memory_space<vmem>>, vector<8x256xf32>
    tpu.vector_store %arg1[%c0_1, %c0_2], %1 {strides = array<i32>} : memref<8x256xf32, #tpu.memory_space<vmem>>, vector<8x256xf32>,
    return
  }
}

</mosaic_0001>

<llo_original>
// kernel: tpu_custom_call.1
$region0: #{tpu_custom_call.1}
  #allocation0 [shape = 'u32[]', space=smem, size = 0x4, offset = 0x4, fixed_abs, tag = 'smem constant byte address 0x4 - core index']
  #allocation1 [shape = 'u32[72,128]{1,0:T(1,128)}', space=vmem, size = 0x9000, scoped, tag = 'internal scratch']
  %s0 = inlined_call_operand.hbm [shape: f32[8,256], index: 0, kind: input, shape index: {}]
  %s1 = inlined_call_operand.hbm [shape: f32[8,256], index: 1, kind: output, shape index: {}]
  %s2 = sld [smem:[#allocation0]]
  $region18: #{tpu_custom_call.1} parent=0
    _
  %s4 = ssub.s32 1, %s2
  %s5 = scalar_select 0, %s4, %s2
  $region1: #{tpu_custom_call.1} parent=0
    #allocation2 [shape = 'u8[8192]{0}', space=vmem, size = 0x2000, scoped, tag = 'input window, operand 0, single buffered']
    #allocation3 [shape = 's32[1]{0}', space=sflag, size = 0x4, scoped, tag = 'scoped memory for tpu_custom_call.1']
    #allocation4 [shape = 's32[1]{0}', space=sflag, size = 0x4, scoped, tag = 'scoped memory for tpu_custom_call.1']
    #allocation5 [shape = 'u8[8192]{0}', space=vmem, size = 0x2000, scoped, tag = 'output window, operand 0, single buffered']
    %6 = vsyncpa [#allocation3], 0
    %7 = vsyncpa [#allocation4], 0
    // Predicated region
    $region2: #{tpu_custom_call.1} parent=1 // pred_check
      _
    $region3: #{tpu_custom_call.1} parent=1 // pred_check_branch
      %9 = sbr.rel (0) target = $region5
    $region4: #{tpu_custom_call.1} parent=1 // pred_region
      %11 = vsyncadd [#allocation3], 0
      %s13 = sshll.u32 %s0, 4
      %s14 = int_to_ptr.hbm [resolvable:$true] %s13
      %s15 = sshll.u32 [#allocation2], 4
      %s16 = int_to_ptr.vmem [resolvable:$true] %s15
      %18 = dma.hbm_to_vmem [thread:$0]  %s14, 256, %s16, [#allocation3]
    $region5: #{tpu_custom_call.1} parent=1 // pred_fallthru
      _
    // Predicated region
    $region6: #{tpu_custom_call.1} parent=1 // pred_check
      _
    $region7: #{tpu_custom_call.1} parent=1 // pred_check_branch
      %20 = sbr.rel (0) target = $region9
    $region8: #{tpu_custom_call.1} parent=1 // pred_region
      %22 = dma.done [#allocation3], 256
    $region9: #{tpu_custom_call.1} parent=1 // pred_fallthru
      _
    %v23 = vld [vmem:[#allocation2] sm:$0xff]
    %v24 = vld [vmem:[#allocation2 + $0x8] sm:$0xff]
    %25 = vrot.lane.b32.xlu0 %v23, 17
    %v26 = vpop.permute.xlu0 %25
    %27 = vrot.lane.b32.xlu0 %v24, 17
    %v28 = vpop.permute.xlu0 %27
    %v29 = vlaneseq
    %v30 = vand.u32 %v29, 127
    %vm31 = vcmp.lt.s32.totalorder %v30, 17
    %v32 = vsel %vm31, %v26, %v28
    %v33 = vsel %vm31, %v28, %v26
    %34 = vst [vmem:[#allocation5] sm:$0xff] %v33
    %35 = vst [vmem:[#allocation5 + $0x8] sm:$0xff] %v32
    // Predicated region
    $region10: #{tpu_custom_call.1} parent=1 // pred_check
      _
    $region11: #{tpu_custom_call.1} parent=1 // pred_check_branch
      %37 = sbr.rel (0) target = $region13
    $region12: #{tpu_custom_call.1} parent=1 // pred_region
      %39 = vsyncadd [#allocation4], 0
      %s41 = sshll.u32 [#allocation5], 4
      %s42 = int_to_ptr.vmem [resolvable:$true] %s41
      %s43 = sshll.u32 %s1, 4
      %s44 = int_to_ptr.hbm [resolvable:$true] %s43
      %46 = dma.vmem_to_hbm [thread:$0]  %s42, 256, %s44, [#allocation4]
    $region13: #{tpu_custom_call.1} parent=1 // pred_fallthru
      _
    // Predicated region
    $region14: #{tpu_custom_call.1} parent=1 // pred_check
      _
    $region15: #{tpu_custom_call.1} parent=1 // pred_check_branch
      %48 = sbr.rel (0) target = $region17
    $region16: #{tpu_custom_call.1} parent=1 // pred_region
      %50 = dma.done [#allocation4], 256
    $region17: #{tpu_custom_call.1} parent=1 // pred_fallthru
      _
    %51 = vsyncpa [#allocation3], 1
    %52 = vsyncpa [#allocation4], 1

</llo_original>
